<compile_context>
chip_gen: v5e
topology: v5e:2x2
jax: 0.10.0
libtpu: 0.0.40
codegen_flags: <defaults>
</compile_context>

<pallas_src>
import math

import jax
import jax.numpy as jnp
from jax.experimental import pallas as pl
from jax.experimental.pallas import tpu as pltpu


def _copy_kernel(x_ref, o_ref):
    # Identity touch of one sublane-full, lane-dense tile (in-place via aliasing).
    o_ref[...] = x_ref[...]


def _sublane_pack(dtype):
    """Rows per packed sublane group: 8 for f32, 16 for bf16, 32 for int8/fp8."""
    itemsize = jnp.dtype(dtype).itemsize
    return max(8, 8 * (4 // itemsize))


def _choose_lane_width(total, pack, max_elems):
    """Largest multiple of 128 that divides `total`, keeps rows >= pack and keeps
    a pack-row tile inside the VMEM budget.  None if no such width exists."""
    cap = min(total // pack, max_elems // pack, 4096)
    lane = (cap // 128) * 128
    while lane >= 128:
        if total % lane == 0:
            return lane
        lane -= 128
    return None


def _row_tile(rows, lane, pack, max_elems):
    """Sublane tile: full rows if they fit the budget, else a pack-aligned chunk.
    Splits into >= 2 blocks when possible so v7x's two TCs both issue DMA."""
    budget = max(pack, ((max_elems // lane) // pack) * pack)
    tb = rows if rows <= budget else budget
    if rows <= tb and rows >= 2 * pack:
        half = (rows + 1) // 2
        tb = ((half + pack - 1) // pack) * pack
    return tb


def _fallback_tiles(nrows, ncols, pack, max_elems):
    """(B, flat) geometry for shapes where no 128-divisible lane width exists.
    Budget math is clamped so tb*tf never exceeds max_elems (old overshoot bug)."""
    if ncols * pack <= max_elems:
        tf = ncols                                       # full dim: always legal
    else:
        tf = max(128, ((max_elems // pack) // 128) * 128)
    row_budget = max(pack, max_elems // tf)
    tb = nrows if nrows <= row_budget else max(pack, (row_budget // pack) * pack)
    return tb, tf


def flatten_layer(x, *, max_tile_bytes=2 * 1024 * 1024):
    """Pallas equivalent of FlattenLayer.forward: x.view(B, -1).

    The reshape itself is metadata-only for XLA; the Pallas kernel is an
    in-place (aliased), lane-dense identity touch of the flat buffer.
    """
    B = x.shape[0]
    flat = math.prod(x.shape[1:]) if x.ndim > 1 else 1
    total = B * flat

    itemsize = jnp.dtype(x.dtype).itemsize
    pack = _sublane_pack(x.dtype)
    max_elems = max(pack * 128, max_tile_bytes // itemsize)

    lane = _choose_lane_width(total, pack, max_elems)
    if lane is not None:
        rows = total // lane
        tb = _row_tile(rows, lane, pack, max_elems)
        shape2d = (rows, lane)
        block = (tb, lane)
        grid = (pl.cdiv(rows, tb),)
        in_spec = pl.BlockSpec(block, lambda i: (i, 0))
        out_spec = pl.BlockSpec(block, lambda i: (i, 0))
        semantics = ("parallel",)
    else:
        # Degenerate shapes (total not a multiple of 128): keep (B, flat);
        # ragged edge blocks are masked but correct.
        tb, tf = _fallback_tiles(B, flat, pack, max_elems)
        shape2d = (B, flat)
        block = (tb, tf)
        grid = (pl.cdiv(B, tb), pl.cdiv(flat, tf))
        in_spec = pl.BlockSpec(block, lambda i, j: (i, j))
        out_spec = pl.BlockSpec(block, lambda i, j: (i, j))
        semantics = ("parallel", "parallel")

    # Row-major flatten in the wrapper: metadata-only bitcast under jit.
    x2 = jnp.reshape(x, shape2d)

    out2 = pl.pallas_call(
        _copy_kernel,
        out_shape=jax.ShapeDtypeStruct(shape2d, x.dtype),
        grid=grid,
        in_specs=[in_spec],
        out_specs=out_spec,
        # In-place: output 0 aliases input 0 (no second HBM buffer when the
        # input buffer is donatable / an intermediate of a larger jit).
        input_output_aliases={0: 0},
        cost_estimate=pl.CostEstimate(
            flops=0, transcendentals=0, bytes_accessed=2 * total * itemsize),
        compiler_params=pltpu.CompilerParams(dimension_semantics=semantics),
    )(x2)

    return jnp.reshape(out2, (B, flat))


if __name__ == "__main__":
    key = jax.random.PRNGKey(0)
    # Small NCHW input consistent with the module: batch=2, channels=4, 16x16 spatial.
    x = jax.random.normal(key, (2, 4, 16, 16), dtype=jnp.float32)

    # Run under jit so the wrapper reshapes are pure bitcasts.
    out = jax.jit(flatten_layer)(x)
    out = jax.block_until_ready(out)

    # Correctness check against the reference semantics (x.view(B, -1)).
    ref = jnp.reshape(x, (x.shape[0], -1))
    assert out.shape == (2, 4 * 16 * 16), out.shape
    assert out.dtype == x.dtype
    assert jnp.array_equal(out, ref), "mismatch vs reference flatten"

    print("KERNEL_OK")
</pallas_src>

<mosaic_0001>
module attributes {stable_mosaic.version = 11 : i64} {
  func.func @_copy_kernel(%arg0: i32, %arg1: memref<8x256xf32, #tpu.memory_space<vmem>>, %arg2: memref<8x256xf32, #tpu.memory_space<vmem>>) attributes {dimension_semantics = [#tpu.dimension_semantics<parallel>], iteration_bounds = array<i64: 1>, scalar_prefetch = 0 : i64, scratch_operands = 0 : i64, tpu.core_type = #tpu.core_type<tc>, window_params = [{transform_indices = @transform_0, window_bounds = array<i64: 8, 256>}, {transform_indices = @transform_1, window_bounds = array<i64: 8, 256>}]} {
    %c0 = arith.constant 0 : index
    %c0_0 = arith.constant 0 : index
    %0 = vector.load %arg1[%c0, %c0_0] : memref<8x256xf32, #tpu.memory_space<vmem>>, vector<8x256xf32>
    %c0_1 = arith.constant 0 : index
    %c0_2 = arith.constant 0 : index
    %1 = vector.load %arg2[%c0_1, %c0_2] : memref<8x256xf32, #tpu.memory_space<vmem>>, vector<8x256xf32>
    tpu.vector_store %arg2[%c0_1, %c0_2], %0 {strides = array<i32>} : memref<8x256xf32, #tpu.memory_space<vmem>>, vector<8x256xf32>,
    return
  }
  func.func @transform_0(%arg0: i32) -> (i32, i32) {
    %c0_i32 = arith.constant 0 : i32
    %c0_i32_0 = arith.constant 0 : i32
    return %arg0, %c0_i32 : i32, i32
  }
  func.func @transform_1(%arg0: i32) -> (i32, i32) {
    %c0_i32 = arith.constant 0 : i32
    %c0_i32_0 = arith.constant 0 : i32
    return %arg0, %c0_i32 : i32, i32
  }
}

</mosaic_0001>

<llo_original>
// kernel: flatten_layer.1
$region0: #{flatten_layer.1}
  #allocation0 [shape = 'u32[]', space=smem, size = 0x4, offset = 0x4, fixed_abs, tag = 'smem constant byte address 0x4 - core index']
  #allocation1 [shape = 'u32[72,128]{1,0:T(1,128)}', space=vmem, size = 0x9000, scoped, tag = 'internal scratch']
  %s0 = inlined_call_operand.vmem [shape: f32[8,256], index: 0, kind: input, shape index: {}, may-alias: {0,1}]
  %s1 = inlined_call_operand.vmem [shape: f32[8,256], index: 1, kind: output, shape index: {}, may-alias: {0,1}]
  %s2 = sld [smem:[#allocation0]]
  $region14: #{flatten_layer.1} parent=0
    _
  %s4 = ssub.s32 1, %s2
  %s5 = scalar_select 0, %s4, %s2
  // Predicated region
  $region2: #{flatten_layer.1} parent=0 // pred_check
    _
  $region3: #{flatten_layer.1} parent=0 // pred_check_branch
    %7 = sbr.rel (0) target = $region5
  $region4: #{flatten_layer.1} parent=0 // pred_region
    _
  $region5: #{flatten_layer.1} parent=0 // pred_fallthru
    _
  %v8 = vld [vmem:[%s0] sm:$0xff]
  %v9 = vld [vmem:[%s0 + $0x8] sm:$0xff]
  %10 = vst [vmem:[%s1] sm:$0xff] %v8
  %11 = vst [vmem:[%s1 + $0x8] sm:$0xff] %v9
  // Predicated region
  $region6: #{flatten_layer.1} parent=0 // pred_check
    _
  $region7: #{flatten_layer.1} parent=0 // pred_check_branch
    %13 = sbr.rel (0) target = $region9
  $region8: #{flatten_layer.1} parent=0 // pred_region
    _
  $region9: #{flatten_layer.1} parent=0 // pred_fallthru
    _
  // Predicated region
  $region10: #{flatten_layer.1} parent=0 // pred_check
    _
  $region11: #{flatten_layer.1} parent=0 // pred_check_branch
    %15 = sbr.rel (0) target = $region13
  $region12: #{flatten_layer.1} parent=0 // pred_region
    _
  $region13: #{flatten_layer.1} parent=0 // pred_fallthru
    _

</llo_original>
